<compile_context>
chip_gen: v7x
topology: tpu7x:2x2x1
jax: 0.10.0
libtpu: 0.0.40
codegen_flags: <defaults>
</compile_context>

<pallas_src>
import functools

import jax
import jax.numpy as jnp
from jax.experimental import pallas as pl
from jax.experimental.pallas import tpu as pltpu

_LANES = 128
_SUBLANES = 8
_BLOCK_BYTES = 2 * 1024 * 1024       # per-input block byte budget (dtype-aware rows)
_VMEM_LIMIT_BYTES = 32 * 1024 * 1024  # explicit scoped-VMEM request (v5e default is 16 MiB)
_MIN_KERNEL_ELEMS = _SUBLANES * _LANES  # below this, plain JAX beats a kernel launch


def _round_up(x, m):
    return ((x + m - 1) // m) * m


def _cores_per_device():
    """TensorCores per JAX device (2 on v7x-style megacore devices, else 1)."""
    # TODO(synk): on v7x, verify in a profile that the 'parallel' axis actually
    # shards across both TCs; if not, switch it to pltpu.CORE_PARALLEL.
    try:
        n = int(getattr(jax.devices()[0], "num_cores", 1))
    except Exception:
        n = 1
    return max(1, min(2, n))


def _msle_kernel(p_ref, t_ref, sum_ref, cnt_ref, sum_acc, cnt_acc, *,
                 n_full_blocks, rem_elems, tile_rows):
    """Accumulate (sum of finite losses, finite count) into vreg-sized scratch."""
    c = pl.program_id(0)            # core-split axis ("parallel")
    i = pl.program_id(1)            # sequential reduction axis ("arbitrary")
    steps = pl.num_programs(1)
    bidx = c * steps + i            # global block index (small -> int32 safe)

    @pl.when(i == 0)
    def _init():
        sum_acc[...] = jnp.zeros_like(sum_acc)
        cnt_acc[...] = jnp.zeros_like(cnt_acc)

    # Cast to f32 on the VPU; HBM traffic stays in the input dtype.
    p = p_ref[...].astype(jnp.float32)
    t = t_ref[...].astype(jnp.float32)
    # NOTE: ratio form kept deliberately (see header) -- exact torch semantics.
    l = jnp.log((t + 1.0) / (p + 1.0))
    loss = l * l
    finite = loss < jnp.inf         # loss is >= 0 or NaN, so no abs() needed

    def _accumulate(valid):
        s = jnp.where(valid, loss, 0.0).reshape(
            tile_rows // _SUBLANES, _SUBLANES, _LANES)
        n = valid.astype(jnp.float32).reshape(
            tile_rows // _SUBLANES, _SUBLANES, _LANES)
        sum_acc[...] += jnp.sum(s, axis=0)
        cnt_acc[...] += jnp.sum(n, axis=0)

    # Steady state: every element of this block is in-range -> finiteness only.
    @pl.when(bidx < n_full_blocks)
    def _steady():
        _accumulate(finite)

    # Cold path: partial last block and clamped-duplicate blocks also need the
    # local-index bounds mask (built only here).
    @pl.when(bidx >= n_full_blocks)
    def _tail():
        row = jax.lax.broadcasted_iota(jnp.int32, (tile_rows, _LANES), 0)
        lane = jax.lax.broadcasted_iota(jnp.int32, (tile_rows, _LANES), 1)
        local_idx = row * _LANES + lane
        limit = jnp.where(bidx == n_full_blocks, rem_elems, 0)
        _accumulate(finite & (local_idx < limit))

    @pl.when(i == steps - 1)
    def _finalize():
        sum_ref[...] = sum_acc[...]
        cnt_ref[...] = cnt_acc[...]


def _pallas_sums(p2, t2, n_main):
    """p2/t2: [rows, 128] slabs (original dtype). Returns (sum, count) of the
    finite per-element MSLE losses over the first n_main elements."""
    rows = p2.shape[0]
    itemsize = p2.dtype.itemsize
    budget_rows = max(_SUBLANES, _BLOCK_BYTES // (_LANES * itemsize))
    tile_rows = min(budget_rows, _round_up(rows, _SUBLANES))
    block_elems = tile_rows * _LANES
    num_blocks = pl.cdiv(rows, tile_rows)
    ncores = max(1, min(_cores_per_device(), num_blocks))
    steps = pl.cdiv(num_blocks, ncores)

    n_full_blocks = n_main // block_elems   # static Python ints -> no int32 risk
    rem_elems = n_main % block_elems

    def in_map(c, i):
        # Clamp so out-of-range steps (odd block counts on a 2-core split)
        # re-read the last real block; their contribution is masked in-kernel.
        return (jnp.minimum(c * steps + i, num_blocks - 1), 0)

    kernel = functools.partial(_msle_kernel, n_full_blocks=n_full_blocks,
                               rem_elems=rem_elems, tile_rows=tile_rows)

    out_sum, out_cnt = pl.pallas_call(
        kernel,
        out_shape=(
            jax.ShapeDtypeStruct((ncores * _SUBLANES, _LANES), jnp.float32),
            jax.ShapeDtypeStruct((ncores * _SUBLANES, _LANES), jnp.float32),
        ),
        grid_spec=pltpu.PrefetchScalarGridSpec(
            num_scalar_prefetch=0,
            grid=(ncores, steps),
            in_specs=[
                pl.BlockSpec((tile_rows, _LANES), in_map),
                pl.BlockSpec((tile_rows, _LANES), in_map),
            ],
            out_specs=[
                pl.BlockSpec((_SUBLANES, _LANES), lambda c, i: (c, 0)),
                pl.BlockSpec((_SUBLANES, _LANES), lambda c, i: (c, 0)),
            ],
            scratch_shapes=[
                pltpu.VMEM((_SUBLANES, _LANES), jnp.float32),
                pltpu.VMEM((_SUBLANES, _LANES), jnp.float32),
            ],
        ),
        compiler_params=pltpu.CompilerParams(
            dimension_semantics=("parallel", "arbitrary"),
            vmem_limit_bytes=_VMEM_LIMIT_BYTES),
    )(p2, t2)

    return jnp.sum(out_sum), jnp.sum(out_cnt)


@jax.jit
def _msle_single(y_pred, y_true):
    """Per-tensor MSLE with reduction='mean' (finite-masked mean)."""
    if y_pred.shape != y_true.shape:
        y_pred, y_true = jnp.broadcast_arrays(y_pred, y_true)
    n = int(y_true.size)
    flat_p = jnp.ravel(y_pred)      # keep original dtype; cast happens in-kernel
    flat_t = jnp.ravel(y_true)

    m = (n // _LANES) * _LANES      # elements handled by the kernel
    total_sum = jnp.float32(0.0)
    total_cnt = jnp.float32(0.0)

    if m >= _MIN_KERNEL_ELEMS:
        main_p = flat_p if m == n else flat_p[:m]
        main_t = flat_t if m == n else flat_t[:m]
        rows = m // _LANES
        ksum, kcnt = _pallas_sums(main_p.reshape(rows, _LANES),
                                  main_t.reshape(rows, _LANES), m)
        total_sum += ksum
        total_cnt += kcnt
    else:
        m = 0                        # too small for a kernel launch: all-JAX

    if m < n:                        # ragged tail (< 128 elems) in plain JAX
        tp = flat_p[m:].astype(jnp.float32)
        tt = flat_t[m:].astype(jnp.float32)
        tl = jnp.log((tt + 1.0) / (tp + 1.0))
        tloss = tl * tl
        tvalid = jnp.isfinite(tloss)
        total_sum += jnp.sum(jnp.where(tvalid, tloss, 0.0))
        total_cnt += jnp.sum(tvalid.astype(jnp.float32))

    return total_sum / total_cnt


def msle_loss(y_pred, y_true, reduction="mean"):
    """Pallas-backed equivalent of MSLELoss.forward (tensor or list-of-tensor)."""
    if reduction != "mean":
        raise ValueError(f"Reduction {reduction} not supported.")
    pred_is_list = isinstance(y_pred, (list, tuple))
    true_is_list = isinstance(y_true, (list, tuple))
    if not pred_is_list and not true_is_list:
        y_pred, y_true = [y_pred], [y_true]
    elif pred_is_list and true_is_list:
        pass
    else:
        raise ValueError(
            "y_pred and y_true must be of the same type. "
            f"Type y_pred: {type(y_pred)}, type y_true: {type(y_true)}"
        )
    # TODO(synk): fuse the list case into a single segmented pallas_call
    # (scalar-prefetched segment offsets, per-segment sum/count rows) to
    # amortize launch overhead for long lists of small tensors.
    loss = jnp.float32(0.0)
    for p, t in zip(y_pred, y_true):
        loss = loss + _msle_single(p, t)
    return loss


if __name__ == "__main__":
    key = jax.random.PRNGKey(0)
    k1, k2, k3, k4, k5, k6 = jax.random.split(key, 6)

    # Pair 1: NCHW tensors with non-negative values plus one injected invalid
    # prediction (-1 -> division by zero -> inf loss -> masked out).
    y_true_1 = jnp.abs(jax.random.normal(k1, (2, 4, 16, 16), dtype=jnp.float32))
    y_pred_1 = jnp.abs(jax.random.normal(k2, (2, 4, 16, 16), dtype=jnp.float32))
    y_pred_1 = y_pred_1.at[0, 0, 0, 0].set(-1.0)

    # Pair 2: small tensor (512 elems -> plain-JAX fast path) with an injected
    # invalid target (-1 -> log(0) -> -inf -> masked out).
    y_true_2 = jnp.abs(jax.random.normal(k3, (2, 4, 8, 8), dtype=jnp.float32))
    y_pred_2 = jnp.abs(jax.random.normal(k4, (2, 4, 8, 8), dtype=jnp.float32))
    y_true_2 = y_true_2.at[1, 3, 7, 7].set(-1.0)

    # Pair 3: ragged size (1533 elems) exercising the partial edge block in
    # the kernel plus the <128-element plain-JAX remainder path.
    y_true_3 = jnp.abs(jax.random.normal(k5, (3, 7, 73), dtype=jnp.float32))
    y_pred_3 = jnp.abs(jax.random.normal(k6, (3, 7, 73), dtype=jnp.float32))

    out = msle_loss([y_pred_1, y_pred_2, y_pred_3],
                    [y_true_1, y_true_2, y_true_3])
    out = jax.block_until_ready(out)

    # Pure-JAX reference of the PyTorch MSLELoss semantics.
    def ref_impl(p, t):
        loss = jnp.log((t + 1.0) / (p + 1.0)) ** 2
        valid = jnp.isfinite(loss)
        return jnp.sum(jnp.where(valid, loss, 0.0)) / jnp.sum(valid)

    ref = (ref_impl(y_pred_1, y_true_1)
           + ref_impl(y_pred_2, y_true_2)
           + ref_impl(y_pred_3, y_true_3))
    assert jnp.allclose(out, ref, rtol=1e-5, atol=1e-6), (out, ref)

    print("KERNEL_OK")
</pallas_src>

<mosaic_0001>
module attributes {stable_mosaic.version = 11 : i64} {
  func.func @_msle_kernel(%arg0: i32, %arg1: i32, %arg2: memref<16x128xf32, #tpu.memory_space<vmem>>, %arg3: memref<16x128xf32, #tpu.memory_space<vmem>>, %arg4: memref<8x128xf32, #tpu.memory_space<vmem>>, %arg5: memref<8x128xf32, #tpu.memory_space<vmem>>, %arg6: memref<8x128xf32, #tpu.memory_space<vmem>>, %arg7: memref<8x128xf32, #tpu.memory_space<vmem>>) attributes {dimension_semantics = [#tpu.dimension_semantics<parallel>, #tpu.dimension_semantics<arbitrary>], iteration_bounds = array<i64: 1, 1>, scalar_prefetch = 0 : i64, scratch_operands = 2 : i64, tpu.core_type = #tpu.core_type<tc>, window_params = [{transform_indices = @transform_0, window_bounds = array<i64: 16, 128>}, {transform_indices = @transform_1, window_bounds = array<i64: 16, 128>}, {transform_indices = @transform_2, window_bounds = array<i64: 8, 128>}, {transform_indices = @transform_3, window_bounds = array<i64: 8, 128>}]} {
    %c1_i32 = arith.constant 1 : i32
    %0 = arith.muli %arg0, %c1_i32 : i32
    %1 = arith.addi %0, %arg1 : i32
    %c0_i32 = arith.constant 0 : i32
    %2 = arith.cmpi eq, %arg1, %c0_i32 : i32
    %3 = arith.extui %2 : i1 to i32
    %c0_i32_0 = arith.constant 0 : i32
    %4 = arith.cmpi ne, %3, %c0_i32_0 : i32
    scf.if %4 {
      %cst_12 = arith.constant 0.000000e+00 : f32
      %25 = vector.broadcast %cst_12 : f32 to vector<8x128xf32>
      %c0_13 = arith.constant 0 : index
      %c0_14 = arith.constant 0 : index
      %26 = vector.load %arg6[%c0_13, %c0_14] : memref<8x128xf32, #tpu.memory_space<vmem>>, vector<8x128xf32>
      tpu.vector_store %arg6[%c0_13, %c0_14], %25 {strides = array<i32>} : memref<8x128xf32, #tpu.memory_space<vmem>>, vector<8x128xf32>,
      %cst_15 = arith.constant 0.000000e+00 : f32
      %27 = vector.broadcast %cst_15 : f32 to vector<8x128xf32>
      %c0_16 = arith.constant 0 : index
      %c0_17 = arith.constant 0 : index
      %28 = vector.load %arg7[%c0_16, %c0_17] : memref<8x128xf32, #tpu.memory_space<vmem>>, vector<8x128xf32>
      tpu.vector_store %arg7[%c0_16, %c0_17], %27 {strides = array<i32>} : memref<8x128xf32, #tpu.memory_space<vmem>>, vector<8x128xf32>,
    } else {
    }
    %c0 = arith.constant 0 : index
    %c0_1 = arith.constant 0 : index
    %5 = vector.load %arg2[%c0, %c0_1] : memref<16x128xf32, #tpu.memory_space<vmem>>, vector<16x128xf32>
    %c0_2 = arith.constant 0 : index
    %c0_3 = arith.constant 0 : index
    %6 = vector.load %arg3[%c0_2, %c0_3] : memref<16x128xf32, #tpu.memory_space<vmem>>, vector<16x128xf32>
    %cst = arith.constant 1.000000e+00 : f32
    %7 = vector.broadcast %cst : f32 to vector<16x128xf32>
    %8 = arith.addf %6, %7 : vector<16x128xf32>
    %cst_4 = arith.constant 1.000000e+00 : f32
    %9 = vector.broadcast %cst_4 : f32 to vector<16x128xf32>
    %10 = arith.addf %5, %9 : vector<16x128xf32>
    %11 = arith.divf %8, %10 : vector<16x128xf32>
    %12 = math.log %11 : vector<16x128xf32>
    %13 = arith.mulf %12, %12 : vector<16x128xf32>
    %cst_5 = arith.constant 0x7F800000 : f32
    %14 = vector.broadcast %cst_5 : f32 to vector<16x128xf32>
    %15 = arith.cmpf olt, %13, %14 : vector<16x128xf32>
    %c1_i32_6 = arith.constant 1 : i32
    %16 = arith.cmpi slt, %1, %c1_i32_6 : i32
    %17 = arith.extui %16 : i1 to i32
    %c0_i32_7 = arith.constant 0 : i32
    %18 = arith.cmpi ne, %17, %c0_i32_7 : i32
    scf.if %18 {
      %cst_12 = arith.constant 0.000000e+00 : f32
      %25 = vector.broadcast %cst_12 : f32 to vector<16x128xf32>
      %26 = arith.select %15, %13, %25 : vector<16x128xi1>, vector<16x128xf32>
      %27 = vector.shape_cast %26 : vector<16x128xf32> to vector<2x8x128xf32>
      %28 = arith.extui %15 : vector<16x128xi1> to vector<16x128xi32>
      %29 = arith.sitofp %28 : vector<16x128xi32> to vector<16x128xf32>
      %30 = vector.shape_cast %29 : vector<16x128xf32> to vector<2x8x128xf32>
      %c0_13 = arith.constant 0 : index
      %c0_14 = arith.constant 0 : index
      %31 = vector.load %arg6[%c0_13, %c0_14] : memref<8x128xf32, #tpu.memory_space<vmem>>, vector<8x128xf32>
      %cst_15 = arith.constant dense<0.000000e+00> : vector<8x128xf32>
      %32 = vector.multi_reduction <add>, %27, %cst_15 [0] : vector<2x8x128xf32> to vector<8x128xf32>
      %33 = arith.addf %31, %32 : vector<8x128xf32>
      %c0_16 = arith.constant 0 : index
      %c0_17 = arith.constant 0 : index
      %34 = vector.load %arg6[%c0_16, %c0_17] : memref<8x128xf32, #tpu.memory_space<vmem>>, vector<8x128xf32>
      tpu.vector_store %arg6[%c0_16, %c0_17], %33 {strides = array<i32>} : memref<8x128xf32, #tpu.memory_space<vmem>>, vector<8x128xf32>,
      %c0_18 = arith.constant 0 : index
      %c0_19 = arith.constant 0 : index
      %35 = vector.load %arg7[%c0_18, %c0_19] : memref<8x128xf32, #tpu.memory_space<vmem>>, vector<8x128xf32>
      %cst_20 = arith.constant dense<0.000000e+00> : vector<8x128xf32>
      %36 = vector.multi_reduction <add>, %30, %cst_20 [0] : vector<2x8x128xf32> to vector<8x128xf32>
      %37 = arith.addf %35, %36 : vector<8x128xf32>
      %c0_21 = arith.constant 0 : index
      %c0_22 = arith.constant 0 : index
      %38 = vector.load %arg7[%c0_21, %c0_22] : memref<8x128xf32, #tpu.memory_space<vmem>>, vector<8x128xf32>
      tpu.vector_store %arg7[%c0_21, %c0_22], %37 {strides = array<i32>} : memref<8x128xf32, #tpu.memory_space<vmem>>, vector<8x128xf32>,
    } else {
    }
    %c1_i32_8 = arith.constant 1 : i32
    %19 = arith.cmpi sge, %1, %c1_i32_8 : i32
    %20 = arith.extui %19 : i1 to i32
    %c0_i32_9 = arith.constant 0 : i32
    %21 = arith.cmpi ne, %20, %c0_i32_9 : i32
    scf.if %21 {
      %25 = tpu.iota {dimensions = array<i32: 0>} : vector<16x128xi32>
      %26 = tpu.iota {dimensions = array<i32: 1>} : vector<16x128xi32>
      %c128_i32 = arith.constant 128 : i32
      %27 = vector.broadcast %c128_i32 : i32 to vector<16x128xi32>
      %28 = arith.muli %25, %27 : vector<16x128xi32>
      %29 = arith.addi %28, %26 : vector<16x128xi32>
      %c1_i32_12 = arith.constant 1 : i32
      %30 = arith.cmpi eq, %1, %c1_i32_12 : i32
      %c0_i32_13 = arith.constant 0 : i32
      %c0_i32_14 = arith.constant 0 : i32
      %31 = arith.select %30, %c0_i32_13, %c0_i32_14 : i32
      %32 = vector.broadcast %31 : i32 to vector<16x128xi32>
      %33 = arith.cmpi slt, %29, %32 : vector<16x128xi32>
      %34 = arith.andi %15, %33 : vector<16x128xi1>
      %cst_15 = arith.constant 0.000000e+00 : f32
      %35 = vector.broadcast %cst_15 : f32 to vector<16x128xf32>
      %36 = arith.select %34, %13, %35 : vector<16x128xi1>, vector<16x128xf32>
      %37 = vector.shape_cast %36 : vector<16x128xf32> to vector<2x8x128xf32>
      %38 = arith.extui %34 : vector<16x128xi1> to vector<16x128xi32>
      %39 = arith.sitofp %38 : vector<16x128xi32> to vector<16x128xf32>
      %40 = vector.shape_cast %39 : vector<16x128xf32> to vector<2x8x128xf32>
      %c0_16 = arith.constant 0 : index
      %c0_17 = arith.constant 0 : index
      %41 = vector.load %arg6[%c0_16, %c0_17] : memref<8x128xf32, #tpu.memory_space<vmem>>, vector<8x128xf32>
      %cst_18 = arith.constant dense<0.000000e+00> : vector<8x128xf32>
      %42 = vector.multi_reduction <add>, %37, %cst_18 [0] : vector<2x8x128xf32> to vector<8x128xf32>
      %43 = arith.addf %41, %42 : vector<8x128xf32>
      %c0_19 = arith.constant 0 : index
      %c0_20 = arith.constant 0 : index
      %44 = vector.load %arg6[%c0_19, %c0_20] : memref<8x128xf32, #tpu.memory_space<vmem>>, vector<8x128xf32>
      tpu.vector_store %arg6[%c0_19, %c0_20], %43 {strides = array<i32>} : memref<8x128xf32, #tpu.memory_space<vmem>>, vector<8x128xf32>,
      %c0_21 = arith.constant 0 : index
      %c0_22 = arith.constant 0 : index
      %45 = vector.load %arg7[%c0_21, %c0_22] : memref<8x128xf32, #tpu.memory_space<vmem>>, vector<8x128xf32>
      %cst_23 = arith.constant dense<0.000000e+00> : vector<8x128xf32>
      %46 = vector.multi_reduction <add>, %40, %cst_23 [0] : vector<2x8x128xf32> to vector<8x128xf32>
      %47 = arith.addf %45, %46 : vector<8x128xf32>
      %c0_24 = arith.constant 0 : index
      %c0_25 = arith.constant 0 : index
      %48 = vector.load %arg7[%c0_24, %c0_25] : memref<8x128xf32, #tpu.memory_space<vmem>>, vector<8x128xf32>
      tpu.vector_store %arg7[%c0_24, %c0_25], %47 {strides = array<i32>} : memref<8x128xf32, #tpu.memory_space<vmem>>, vector<8x128xf32>,
    } else {
    }
    %c0_i32_10 = arith.constant 0 : i32
    %22 = arith.cmpi eq, %arg1, %c0_i32_10 : i32
    %23 = arith.extui %22 : i1 to i32
    %c0_i32_11 = arith.constant 0 : i32
    %24 = arith.cmpi ne, %23, %c0_i32_11 : i32
    scf.if %24 {
      %c0_12 = arith.constant 0 : index
      %c0_13 = arith.constant 0 : index
      %25 = vector.load %arg6[%c0_12, %c0_13] : memref<8x128xf32, #tpu.memory_space<vmem>>, vector<8x128xf32>
      %c0_14 = arith.constant 0 : index
      %c0_15 = arith.constant 0 : index
      %26 = vector.load %arg4[%c0_14, %c0_15] : memref<8x128xf32, #tpu.memory_space<vmem>>, vector<8x128xf32>
      tpu.vector_store %arg4[%c0_14, %c0_15], %25 {strides = array<i32>} : memref<8x128xf32, #tpu.memory_space<vmem>>, vector<8x128xf32>,
      %c0_16 = arith.constant 0 : index
      %c0_17 = arith.constant 0 : index
      %27 = vector.load %arg7[%c0_16, %c0_17] : memref<8x128xf32, #tpu.memory_space<vmem>>, vector<8x128xf32>
      %c0_18 = arith.constant 0 : index
      %c0_19 = arith.constant 0 : index
      %28 = vector.load %arg5[%c0_18, %c0_19] : memref<8x128xf32, #tpu.memory_space<vmem>>, vector<8x128xf32>
      tpu.vector_store %arg5[%c0_18, %c0_19], %27 {strides = array<i32>} : memref<8x128xf32, #tpu.memory_space<vmem>>, vector<8x128xf32>,
    } else {
    }
    return
  }
  func.func @transform_0(%arg0: i32, %arg1: i32) -> (i32, i32) {
    %c1_i32 = arith.constant 1 : i32
    %0 = arith.muli %arg0, %c1_i32 : i32
    %1 = arith.addi %0, %arg1 : i32
    %c0_i32 = arith.constant 0 : i32
    %2 = arith.minsi %1, %c0_i32 : i32
    %c0_i32_0 = arith.constant 0 : i32
    %c0_i32_1 = arith.constant 0 : i32
    return %2, %c0_i32_0 : i32, i32
  }
  func.func @transform_1(%arg0: i32, %arg1: i32) -> (i32, i32) {
    %c1_i32 = arith.constant 1 : i32
    %0 = arith.muli %arg0, %c1_i32 : i32
    %1 = arith.addi %0, %arg1 : i32
    %c0_i32 = arith.constant 0 : i32
    %2 = arith.minsi %1, %c0_i32 : i32
    %c0_i32_0 = arith.constant 0 : i32
    %c0_i32_1 = arith.constant 0 : i32
    return %2, %c0_i32_0 : i32, i32
  }
  func.func @transform_2(%arg0: i32, %arg1: i32) -> (i32, i32) {
    %c0_i32 = arith.constant 0 : i32
    %c0_i32_0 = arith.constant 0 : i32
    return %arg0, %c0_i32 : i32, i32
  }
  func.func @transform_3(%arg0: i32, %arg1: i32) -> (i32, i32) {
    %c0_i32 = arith.constant 0 : i32
    %c0_i32_0 = arith.constant 0 : i32
    return %arg0, %c0_i32 : i32, i32
  }
}

</mosaic_0001>

<llo_original>
// kernel: _msle_single.1
$region0: #{_msle_single.1}
  #allocation0 [shape = 'u32[]', space=smem, size = 0x4, offset = 0x4, fixed_abs, tag = 'smem constant byte address 0x4 - core index']
  #allocation1 [shape = 'u32[144,128]{1,0:T(1,128)}', space=vmem, size = 0x12000, scoped, tag = 'internal scratch']
  #allocation2 [shape = 'f32[8,128]{1,0:T(8,128)}', space=vmem, size = 0x1000, scoped, tag = 'scratch operand']
  #allocation3 [shape = 'f32[8,128]{1,0:T(8,128)}', space=vmem, size = 0x1000, scoped, tag = 'scratch operand']
  %s0 = inlined_call_operand.vmem [shape: f32[16,128], index: 0, kind: input, shape index: {}]
  %s1 = inlined_call_operand.vmem [shape: f32[16,128], index: 1, kind: input, shape index: {}]
  %s2 = inlined_call_operand.vmem [shape: f32[8,128], index: 2, kind: output, shape index: {0}]
  %s3 = inlined_call_operand.vmem [shape: f32[8,128], index: 3, kind: output, shape index: {1}]
  %4 = xla_tuple %s2, %s3
  %s5 = sld [smem:[#allocation0]]
  $region42: #{_msle_single.1} parent=0
    _
  %s7 = ssub.s32 1, %s5
  %s8 = scalar_select 0, %s7, %s5
  // Predicated region
  $region2: #{_msle_single.1} parent=0 // pred_check
    _
  $region3: #{_msle_single.1} parent=0 // pred_check_branch
    %10 = sbr.rel (0) target = $region5
  $region4: #{_msle_single.1} parent=0 // pred_region
    %s11 = sadd.s32 0, 0
    %p12 = scmp.lt.s32.totalorder %s11, 0
    %s13 = scalar_select %p12, %s11, 0
    %s14 = smul.u32 2, %s13
    %p15 = scmp.lt.s32.totalorder %s14, 1
    %s16 = scalar_select %p15, %s14, 1
    %s17 = smul.addr %s16, 8
    %s18 = scalar_lea.vmem %s0, %s17
    %s19 = sadd.s32 0, 0
    %p20 = scmp.lt.s32.totalorder %s19, 0
    %s21 = scalar_select %p20, %s19, 0
    %s22 = smul.u32 2, %s21
  $region5: #{_msle_single.1} parent=0 // pred_fallthru
    _
  // Predicated region
  $region6: #{_msle_single.1} parent=0 // pred_check
    _
  $region7: #{_msle_single.1} parent=0 // pred_check_branch
    %24 = sbr.rel (0) target = $region9
  $region8: #{_msle_single.1} parent=0 // pred_region
    %s25 = sadd.s32 0, 0
    %p26 = scmp.lt.s32.totalorder %s25, 0
    %s27 = scalar_select %p26, %s25, 0
    %s28 = smul.u32 2, %s27
    %p29 = scmp.lt.s32.totalorder %s28, 1
    %s30 = scalar_select %p29, %s28, 1
    %s31 = smul.addr %s30, 8
    %s32 = scalar_lea.vmem %s1, %s31
    %s33 = sadd.s32 0, 0
    %p34 = scmp.lt.s32.totalorder %s33, 0
    %s35 = scalar_select %p34, %s33, 0
    %s36 = smul.u32 2, %s35
  $region9: #{_msle_single.1} parent=0 // pred_fallthru
    _
  %s37 = sadd.s32 0, 0
  %p38 = scmp.lt.s32.totalorder %s37, 0
  %s39 = scalar_select %p38, %s37, 0
  %s40 = smul.u32 2, %s39
  %p41 = scmp.lt.s32.totalorder %s40, 1
  %s42 = scalar_select %p41, %s40, 1
  %s43 = smul.addr %s42, 8
  %s44 = scalar_lea.vmem %s0, %s43
  %s45 = sadd.s32 0, 0
  %p46 = scmp.lt.s32.totalorder %s45, 0
  %s47 = scalar_select %p46, %s45, 0
  %s48 = smul.u32 2, %s47
  %p49 = scmp.lt.s32.totalorder %s48, 1
  %s50 = scalar_select %p49, %s48, 1
  %s51 = smul.addr %s50, 8
  %s52 = scalar_lea.vmem %s1, %s51
  %s53 = sadd.s32 0, 0
  %p54 = scmp.lt.s32.totalorder %s53, 0
  %s55 = scalar_select %p54, %s53, 0
  %s56 = smul.u32 2, %s55
  %p57 = scmp.lt.s32.totalorder %s56, 1
  %s58 = scalar_select %p57, %s56, 1
  %s59 = smul.addr %s58, 8
  %s60 = scalar_lea.vmem %s0, %s59
  %s61 = sadd.s32 0, 0
  %p62 = scmp.lt.s32.totalorder %s61, 0
  %s63 = scalar_select %p62, %s61, 0
  %s64 = smul.u32 2, %s63
  %s65 = sadd.s32 0, 0
  %p66 = scmp.lt.s32.totalorder %s65, 0
  %s67 = scalar_select %p66, %s65, 0
  %s68 = smul.u32 2, %s67
  %p69 = scmp.lt.s32.totalorder %s68, 1
  %s70 = scalar_select %p69, %s68, 1
  %s71 = smul.addr %s70, 8
  %s72 = scalar_lea.vmem %s1, %s71
  %s73 = sadd.s32 0, 0
  %p74 = scmp.lt.s32.totalorder %s73, 0
  %s75 = scalar_select %p74, %s73, 0
  %s76 = smul.u32 2, %s75
  %s77 = sadd.s32 0, 0
  %p78 = scmp.eq.s32.totalorder 0, 0
  // Predicated region
  $region10: #{_msle_single.1} parent=0 // pred_check
    %p79 = pneg %p78
  $region11: #{_msle_single.1} parent=0 // pred_check_branch
    %81 = sbr.rel (%p79) target = $region13
  $region12: #{_msle_single.1} parent=0 // pred_region
    %82 = vst [vmem:[#allocation2] sm:$0xff] 0.0
    %83 = vst [vmem:[#allocation3] sm:$0xff] 0.0
  $region13: #{_msle_single.1} parent=0 // pred_fallthru
    _
  %v84 = vld [vmem:[%s60] sm:$0xff]
  %v85 = vld [vmem:[%s60 + $0x8] sm:$0xff]
  %v86 = vld [vmem:[%s72] sm:$0xff]
  %v87 = vld [vmem:[%s72 + $0x8] sm:$0xff]
  %v88 = vadd.f32 %v86, 1.0
  %v89 = vadd.f32 %v87, 1.0
  %v90 = vadd.f32 %v84, 1.0
  %v91 = vadd.f32 %v85, 1.0
  %v92 = vrcp.pop %v90
  %v93 = vmul.f32 %v88, %v92
  %v94 = vrcp.pop %v91
  %v95 = vmul.f32 %v89, %v94
  %v96 = vlog2.pop %v93
  %v97 = vmul.f32 %v96, 0.6931472
  %v98 = vlog2.pop %v95
  %v99 = vmul.f32 %v98, 0.6931472
  %v100 = vmul.f32 %v97, %v97
  %v101 = vmul.f32 %v99, %v99
  %vm102 = vcmp.lt.f32.partialorder %v100, inf
  %vm103 = vcmp.lt.f32.partialorder %v101, inf
  %p104 = scmp.lt.s32.totalorder %s77, 1
  // Predicated region
  $region14: #{_msle_single.1} parent=0 // pred_check
    %p105 = pneg %p104
  $region15: #{_msle_single.1} parent=0 // pred_check_branch
    %107 = sbr.rel (%p105) target = $region17
  $region16: #{_msle_single.1} parent=0 // pred_region
    %v108 = vsel %vm102, %v100, 0.0
    %v109 = vsel %vm103, %v101, 0.0
    %v110 = vsel %vm102, 1, 0
    %v111 = vsel %vm103, 1, 0
    %v112 = vcvt.s32.f32 %v110
    %v113 = vcvt.s32.f32 %v111
    %v114 = vld [vmem:[#allocation2] sm:$0xff]
    %v115 = vadd.f32 %v108, %v109
    %v116 = vadd.f32 %v114, %v115
    %117 = vst [vmem:[#allocation2] sm:$0xff] %v116
    %v118 = vld [vmem:[#allocation3] sm:$0xff]
    %v119 = vadd.f32 %v112, %v113
    %v120 = vadd.f32 %v118, %v119
    %121 = vst [vmem:[#allocation3] sm:$0xff] %v120
  $region17: #{_msle_single.1} parent=0 // pred_fallthru
    _
  %p122 = scmp.ge.s32.totalorder %s77, 1
  // Predicated region
  $region18: #{_msle_single.1} parent=0 // pred_check
    %p123 = pneg %p122
  $region19: #{_msle_single.1} parent=0 // pred_check_branch
    %125 = sbr.rel (%p123) target = $region21
  $region20: #{_msle_single.1} parent=0 // pred_region
    %v126 = vlaneseq
    %v127 = vshrl.u32 %v126, 7
    %v128 = vadd.s32 %v127, 8
    %v129 = vlaneseq
    %v130 = vand.u32 %v129, 127
    %v131 = vmul.u32 %v127, 128
    %v132 = vmul.u32 %v128, 128
    %v133 = vadd.s32 %v131, %v130
    %v134 = vadd.s32 %v132, %v130
    %vm135 = vcmp.lt.s32.totalorder %v133, 0
    %vm136 = vcmp.lt.s32.totalorder %v134, 0
    %vm137 = vmand %vm102, %vm135
    %vm138 = vmand %vm103, %vm136
    %v139 = vsel %vm137, %v100, 0.0
    %v140 = vsel %vm138, %v101, 0.0
    %v141 = vsel %vm137, 1, 0
    %v142 = vsel %vm138, 1, 0
    %v143 = vcvt.s32.f32 %v141
    %v144 = vcvt.s32.f32 %v142
    %v145 = vld [vmem:[#allocation2] sm:$0xff]
    %v146 = vadd.f32 %v139, %v140
    %v147 = vadd.f32 %v145, %v146
    %148 = vst [vmem:[#allocation2] sm:$0xff] %v147
    %v149 = vld [vmem:[#allocation3] sm:$0xff]
    %v150 = vadd.f32 %v143, %v144
    %v151 = vadd.f32 %v149, %v150
    %152 = vst [vmem:[#allocation3] sm:$0xff] %v151
  $region21: #{_msle_single.1} parent=0 // pred_fallthru
    _
  // Predicated region
  $region22: #{_msle_single.1} parent=0 // pred_check
    %p153 = pneg %p78
  $region23: #{_msle_single.1} parent=0 // pred_check_branch
    %155 = sbr.rel (%p153) target = $region25
  $region24: #{_msle_single.1} parent=0 // pred_region
    %v156 = vld [vmem:[#allocation2] sm:$0xff]
    %157 = vst [vmem:[%s2] sm:$0xff] %v156
    %v158 = vld [vmem:[#allocation3] sm:$0xff]
    %159 = vst [vmem:[%s3] sm:$0xff] %v158
  $region25: #{_msle_single.1} parent=0 // pred_fallthru
    _
  // Predicated region
  $region26: #{_msle_single.1} parent=0 // pred_check
    _
  $region27: #{_msle_single.1} parent=0 // pred_check_branch
    %161 = sbr.rel (0) target = $region29
  $region28: #{_msle_single.1} parent=0 // pred_region
    _
  $region29: #{_msle_single.1} parent=0 // pred_fallthru
    _
  // Predicated region
  $region30: #{_msle_single.1} parent=0 // pred_check
    _
  $region31: #{_msle_single.1} parent=0 // pred_check_branch
    %163 = sbr.rel (0) target = $region33
  $region32: #{_msle_single.1} parent=0 // pred_region
    _
  $region33: #{_msle_single.1} parent=0 // pred_fallthru
    _
  // Predicated region
  $region34: #{_msle_single.1} parent=0 // pred_check
    _
  $region35: #{_msle_single.1} parent=0 // pred_check_branch
    %165 = sbr.rel (0) target = $region37
  $region36: #{_msle_single.1} parent=0 // pred_region
    _
  $region37: #{_msle_single.1} parent=0 // pred_fallthru
    _
  // Predicated region
  $region38: #{_msle_single.1} parent=0 // pred_check
    _
  $region39: #{_msle_single.1} parent=0 // pred_check_branch
    %167 = sbr.rel (0) target = $region41
  $region40: #{_msle_single.1} parent=0 // pred_region
    _
  $region41: #{_msle_single.1} parent=0 // pred_fallthru
    _

</llo_original>
